<compile_context>
chip_gen: v5e
topology: v5e:2x2
jax: 0.10.0
libtpu: 0.0.40
codegen_flags: <defaults>
</compile_context>

<pallas_src>
import functools

import jax
import jax.numpy as jnp
from jax import lax
from jax.experimental import pallas as pl
from jax.experimental.pallas import tpu as pltpu


_FUSED_CHUNK = 512  # lanes per in-kernel stats/apply chunk on the fused path


# ------------------------------------------------------------------ kernels --


def _gcln_fused_kernel(x_ref, gamma_ref, beta_ref, o_ref, *, eps, inv_count, chunk):
    """Whole-(C,T)-slab path: chunked stats + normalize + affine in one step."""
    C, T = x_ref.shape
    nfull = T // chunk
    rem = T - nfull * chunk

    # ---- traversal 1 (VMEM resident): sum(x) -> mean -----------------------
    def _sum_chunk(i, s):
        start = pl.multiple_of(i * chunk, chunk)
        return s + jnp.sum(x_ref[:, pl.ds(start, chunk)].astype(jnp.float32))

    s1 = jnp.float32(0.0)
    if nfull > 0:
        s1 = lax.fori_loop(0, nfull, _sum_chunk, s1)
    if rem > 0:
        s1 = s1 + jnp.sum(x_ref[:, pl.ds(nfull * chunk, rem)].astype(jnp.float32))
    mean = s1 * inv_count

    # ---- traversal 2: centered sum of squares -> inv_std -------------------
    # Centered (x - mean)^2 avoids E[x^2] - mean^2 cancellation; the data is
    # already resident in VMEM so the extra traversal costs no HBM traffic.
    def _ssq_chunk(i, s):
        start = pl.multiple_of(i * chunk, chunk)
        d = x_ref[:, pl.ds(start, chunk)].astype(jnp.float32) - mean
        return s + jnp.sum(d * d)

    s2 = jnp.float32(0.0)
    if nfull > 0:
        s2 = lax.fori_loop(0, nfull, _ssq_chunk, s2)
    if rem > 0:
        d = x_ref[:, pl.ds(nfull * chunk, rem)].astype(jnp.float32) - mean
        s2 = s2 + jnp.sum(d * d)
    inv_std = lax.rsqrt(s2 * inv_count + eps)

    # ---- fold affine: y = x * scale + shift (f32 FMA, single output round) --
    gamma = gamma_ref[...].astype(jnp.float32)      # (C, 1)
    beta = beta_ref[...].astype(jnp.float32)        # (C, 1)
    scale = gamma * inv_std                         # (C, 1)
    shift = beta - mean * scale                     # (C, 1)

    if nfull > 0:
        # Hoist the lane-broadcasts out of the loop (JAX does not CSE them).
        scale_b = jnp.broadcast_to(scale, (C, chunk))
        shift_b = jnp.broadcast_to(shift, (C, chunk))

        @pl.loop(0, nfull)
        def _(i):
            start = pl.multiple_of(i * chunk, chunk)
            xf = x_ref[:, pl.ds(start, chunk)].astype(jnp.float32)
            o_ref[:, pl.ds(start, chunk)] = (xf * scale_b + shift_b).astype(o_ref.dtype)

    if rem > 0:
        xf = x_ref[:, pl.ds(nfull * chunk, rem)].astype(jnp.float32)
        o_ref[:, pl.ds(nfull * chunk, rem)] = (xf * scale + shift).astype(o_ref.dtype)


def _gcln_stats_kernel(x_ref, s1_ref, s2_ref, acc1_ref, acc2_ref, *,
                       true_t, tile_t, groups, tiles_per_group, needs_mask):
    """Tiled pass 1: per-(batch, group) sum / sum-of-squares over T tiles."""
    i = pl.program_id(0)            # batch * groups
    j = pl.program_id(1)            # tile within the group

    @pl.when(j == 0)
    def _():
        acc1_ref[...] = jnp.zeros_like(acc1_ref)
        acc2_ref[...] = jnp.zeros_like(acc2_ref)

    xf = x_ref[...].astype(jnp.float32)                      # (C, tile_t)
    if needs_mask:
        # Mask ragged / clamped edge tiles against the true T (garbage in the
        # out-of-bounds part of the block, and fully-out-of-range logical
        # tiles, must contribute 0 to both moments).
        logical_tile = (i % groups) * tiles_per_group + j
        col = logical_tile * tile_t + lax.broadcasted_iota(jnp.int32, xf.shape, 1)
        xf = jnp.where(col < true_t, xf, 0.0)

    acc1_ref[...] += jnp.sum(xf, axis=-1, keepdims=True)     # (C, 1)
    acc2_ref[...] += jnp.sum(xf * xf, axis=-1, keepdims=True)

    @pl.when(j == pl.num_programs(1) - 1)
    def _():
        s1_ref[...] = jnp.sum(acc1_ref[...], keepdims=True)  # (1, 1)
        s2_ref[...] = jnp.sum(acc2_ref[...], keepdims=True)


def _gcln_apply_kernel(x_ref, gamma_ref, beta_ref, s1_ref, s2_ref, o_ref, *,
                       eps, inv_count):
    """Tiled pass 2: fold stats+affine into y = x*scale + shift per tile."""
    s1 = s1_ref[...]                                         # (1, 1) f32
    s2 = s2_ref[...]
    mean = s1 * inv_count
    var = jnp.maximum(s2 * inv_count - mean * mean, 0.0)
    inv_std = lax.rsqrt(var + eps)
    scale = gamma_ref[...].astype(jnp.float32) * inv_std     # (C, 1)
    shift = beta_ref[...].astype(jnp.float32) - mean * scale
    xf = x_ref[...].astype(jnp.float32)                      # f32 FMA on all gens
    o_ref[...] = (xf * scale + shift).astype(o_ref.dtype)


# ------------------------------------------------------------------ helpers --


def _round_up(v, m):
    return -(-v // m) * m


def _tpu_params():
    """Best-effort (per-core VMEM bytes, has-multiple-tensorcores)."""
    vmem_phys = None
    cores = None
    try:
        info = pltpu.get_tpu_info()
        v = getattr(info, "vmem_capacity_bytes", None)
        if v:
            vmem_phys = int(v)
        for name in ("num_cores", "core_count", "num_tensorcores"):
            c = getattr(info, name, None)
            if c:
                cores = int(c)
                break
    except Exception:
        pass
    if vmem_phys is None or cores is None:
        try:
            kind = jax.devices()[0].device_kind.lower()
        except Exception:
            kind = ""
        older_gen = any(g in kind for g in ("v4", "v5", "v6"))
        if vmem_phys is None:
            vmem_phys = (128 << 20) if older_gen else (64 << 20)
        if cores is None:
            cores = 1 if older_gen else 2
    vmem_phys = max(32 << 20, min(int(vmem_phys), 128 << 20))
    return vmem_phys, cores > 1


def _pick_tile_t(C, T):
    # Lane-dense T tile (multiple of 128), ~4 MiB of f32-equivalent per block.
    max_elems = (4 << 20) // 4
    t = max(128, ((max_elems // max(C, 1)) // 128) * 128)
    return min(t, max(128, _round_up(T, 128)))


def _fused_vmem_estimate(C, T, itemsize):
    # Double-buffered in + out + chunk-sized f32 temporaries + slack.
    slab = C * T * itemsize
    return 4 * slab + 6 * C * _FUSED_CHUNK * 4 + (2 << 20)


# ------------------------------------------------------------------ wrappers --


def _gcln_whole_slab(x, gamma, beta, eps, *, vmem_limit):
    N, C, T = x.shape
    inv_count = 1.0 / float(C * T)
    kernel = functools.partial(_gcln_fused_kernel, eps=float(eps),
                               inv_count=inv_count, chunk=_FUSED_CHUNK)
    return pl.pallas_call(
        kernel,
        out_shape=jax.ShapeDtypeStruct((N, C, T), x.dtype),
        grid_spec=pltpu.PrefetchScalarGridSpec(
            num_scalar_prefetch=0,
            grid=(N,),
            in_specs=[
                pl.BlockSpec((None, C, T), lambda n: (n, 0, 0)),
                pl.BlockSpec((C, 1), lambda n: (0, 0)),
                pl.BlockSpec((C, 1), lambda n: (0, 0)),
            ],
            out_specs=pl.BlockSpec((None, C, T), lambda n: (n, 0, 0)),
        ),
        compiler_params=pltpu.CompilerParams(
            dimension_semantics=("parallel",),
            vmem_limit_bytes=int(vmem_limit),
        ),
    )(x, gamma, beta)


def _gcln_tiled(x, gamma, beta, eps, *, multi_core, tile_t=None, groups_override=None):
    N, C, T = x.shape
    in_dtype = x.dtype

    tT = _pick_tile_t(C, T) if tile_t is None else max(128, (int(tile_t) // 128) * 128)
    nT = -(-T // tT)

    if groups_override is not None:
        groups = int(groups_override)
    else:
        groups = 2 if (multi_core and N == 1 and nT >= 2) else 1
    groups = max(1, min(groups, nT))
    tpg = -(-nT // groups)                       # tiles per group
    needs_mask = (T % tT != 0) or (groups * tpg != nT)
    last_tile = nT - 1
    inv_count = 1.0 / float(C * T)

    # ---- Pass 1: per-(batch, group) sum and sum-of-squares (f32). ----------
    stats_kernel = functools.partial(
        _gcln_stats_kernel, true_t=T, tile_t=tT, groups=groups,
        tiles_per_group=tpg, needs_mask=needs_mask)

    def x_stats_map(i, j):
        lt = (i % groups) * tpg + j
        if groups * tpg != nT:
            lt = jnp.minimum(lt, last_tile)      # clamp fully-OOB logical tiles
        return (i // groups, 0, lt)

    s1, s2 = pl.pallas_call(
        stats_kernel,
        out_shape=(
            jax.ShapeDtypeStruct((N * groups, 1, 1), jnp.float32),
            jax.ShapeDtypeStruct((N * groups, 1, 1), jnp.float32),
        ),
        grid_spec=pltpu.PrefetchScalarGridSpec(
            num_scalar_prefetch=0,
            grid=(N * groups, tpg),
            in_specs=[pl.BlockSpec((None, C, tT), x_stats_map)],
            out_specs=(
                pl.BlockSpec((None, 1, 1), lambda i, j: (i, 0, 0)),
                pl.BlockSpec((None, 1, 1), lambda i, j: (i, 0, 0)),
            ),
            scratch_shapes=[
                pltpu.VMEM((C, 1), jnp.float32),
                pltpu.VMEM((C, 1), jnp.float32),
            ],
        ),
        compiler_params=pltpu.CompilerParams(
            dimension_semantics=("parallel", "arbitrary"),
            vmem_limit_bytes=40 << 20,
        ),
    )(x)

    if groups > 1:
        s1 = s1.reshape(N, groups, 1, 1).sum(axis=1)
        s2 = s2.reshape(N, groups, 1, 1).sum(axis=1)

    # ---- Pass 2: fully parallel apply; stats + affine folded in-kernel. ----
    apply_kernel = functools.partial(_gcln_apply_kernel, eps=float(eps),
                                     inv_count=inv_count)
    y = pl.pallas_call(
        apply_kernel,
        out_shape=jax.ShapeDtypeStruct((N, C, T), in_dtype),
        grid_spec=pltpu.PrefetchScalarGridSpec(
            num_scalar_prefetch=0,
            grid=(N, nT),
            in_specs=[
                pl.BlockSpec((None, C, tT), lambda n, j: (n, 0, j)),
                pl.BlockSpec((C, 1), lambda n, j: (0, 0)),
                pl.BlockSpec((C, 1), lambda n, j: (0, 0)),
                pl.BlockSpec((None, 1, 1), lambda n, j: (n, 0, 0)),
                pl.BlockSpec((None, 1, 1), lambda n, j: (n, 0, 0)),
            ],
            out_specs=pl.BlockSpec((None, C, tT), lambda n, j: (n, 0, j)),
        ),
        compiler_params=pltpu.CompilerParams(
            dimension_semantics=("parallel", "parallel"),
            vmem_limit_bytes=40 << 20,
        ),
    )(x, gamma, beta, s1, s2)
    return y


def global_channel_layer_norm(x, gamma=None, beta=None, eps=1e-5, *,
                              force_tiled=False, tile_t=None, force_groups=None):
    """GlobalChannelLayerNorm forward. x: (N, C, T); gamma/beta: (C, 1) or None."""
    if x.ndim != 3:
        raise ValueError("GlobalChannelLayerNorm accepts a 3D tensor (N, C, T)")
    N, C, T = x.shape
    if gamma is None:  # elementwise_affine=False
        gamma = jnp.ones((C, 1), dtype=jnp.float32)
    if beta is None:
        beta = jnp.zeros((C, 1), dtype=jnp.float32)
    gamma = gamma.reshape(C, 1)
    beta = beta.reshape(C, 1)

    vmem_phys, multi_core = _tpu_params()
    itemsize = jnp.dtype(x.dtype).itemsize
    fused_cap = max(40 << 20, (vmem_phys * 3) // 4)     # ~48 MiB v7x, ~96 MiB v5e/v6e
    fused_est = _fused_vmem_estimate(C, T, itemsize)
    fits = fused_est <= fused_cap

    # Prospective tiling (for the "keep both v7x cores busy at N == 1" check).
    tT = _pick_tile_t(C, T) if tile_t is None else max(128, (int(tile_t) // 128) * 128)
    nT = -(-T // tT)
    prefer_tiled = multi_core and N == 1 and nT >= 2

    if force_tiled or prefer_tiled or not fits:
        return _gcln_tiled(x, gamma, beta, eps, multi_core=multi_core,
                           tile_t=tT, groups_override=force_groups)

    vmem_limit = max(32 << 20, min(fused_cap, fused_est + (4 << 20)))
    return _gcln_whole_slab(x, gamma, beta, eps, vmem_limit=vmem_limit)


# ------------------------------------------------------------------ testing --


def _reference(x, gamma, beta, eps=1e-5):
    x32 = x.astype(jnp.float32)
    mean = jnp.mean(x32, axis=(1, 2), keepdims=True)
    var = jnp.mean((x32 - mean) ** 2, axis=(1, 2), keepdims=True)
    y = gamma[None] * (x32 - mean) / jnp.sqrt(var + eps) + beta[None]
    return y.astype(x.dtype)


if __name__ == "__main__":
    eps = 1e-5
    key = jax.random.PRNGKey(0)
    k1, k2, k3, k4, k5, k6 = jax.random.split(key, 6)

    N, C, T = 2, 8, 256
    x = jax.random.normal(k1, (N, C, T), dtype=jnp.float32)
    gamma = 1.0 + 0.1 * jax.random.normal(k2, (C, 1), dtype=jnp.float32)
    beta = 0.1 * jax.random.normal(k3, (C, 1), dtype=jnp.float32)
    ref = _reference(x, gamma, beta, eps)

    # 1) Fused whole-slab fast path (tail-only chunk).
    out = jax.block_until_ready(global_channel_layer_norm(x, gamma, beta, eps))
    assert out.shape == (N, C, T)
    assert jnp.allclose(out, ref, atol=1e-4, rtol=1e-4), "whole-slab mismatch"

    # 2) Fused path with T > chunk and ragged T (chunk loop + tail slice).
    T2 = 700
    x2 = jax.random.normal(k4, (N, C, T2), dtype=jnp.float32)
    ref2 = _reference(x2, gamma, beta, eps)
    out2 = jax.block_until_ready(global_channel_layer_norm(x2, gamma, beta, eps))
    assert jnp.allclose(out2, ref2, atol=1e-4, rtol=1e-4), "fused chunked mismatch"

    # 3) Forced tiled two-pass path, aligned T.
    out_t = jax.block_until_ready(
        global_channel_layer_norm(x, gamma, beta, eps, force_tiled=True, tile_t=128))
    assert jnp.allclose(out_t, ref, atol=1e-4, rtol=1e-4), "tiled mismatch"

    # 4) Forced tiled path with ragged T (edge-tile masking, ragged output).
    Tr = 200
    xr = jax.random.normal(k5, (N, C, Tr), dtype=jnp.float32)
    ref_r = _reference(xr, gamma, beta, eps)
    out_r = jax.block_until_ready(
        global_channel_layer_norm(xr, gamma, beta, eps, force_tiled=True, tile_t=128))
    assert out_r.shape == (N, C, Tr)
    assert jnp.allclose(out_r, ref_r, atol=1e-4, rtol=1e-4), "ragged tiled mismatch"

    # 5) Forced tiled, batch 1, two stats groups (within-batch parallel pass 1,
    #    exercises the clamped/masked last logical tile: nT=3, groups=2).
    x1 = jax.random.normal(k6, (1, C, 384), dtype=jnp.float32)
    ref1 = _reference(x1, gamma, beta, eps)
    out1 = jax.block_until_ready(global_channel_layer_norm(
        x1, gamma, beta, eps, force_tiled=True, tile_t=128, force_groups=2))
    assert jnp.allclose(out1, ref1, atol=1e-4, rtol=1e-4), "grouped stats mismatch"

    # 6) bf16 input: f32 statistics and f32 FMA, single round to bf16.
    xb = x.astype(jnp.bfloat16)
    ref_b = _reference(xb, gamma, beta, eps).astype(jnp.float32)
    out_b = jax.block_until_ready(
        global_channel_layer_norm(xb, gamma, beta, eps)).astype(jnp.float32)
    assert jnp.allclose(out_b, ref_b, atol=1e-1), "bf16 mismatch"

    print("KERNEL_OK")
</pallas_src>

<mosaic_0001>
module attributes {stable_mosaic.version = 11 : i64} {
  func.func @_gcln_fused_kernel(%arg0: i32, %arg1: memref<1x8x256xf32, #tpu.memory_space<vmem>>, %arg2: memref<8x1xf32, #tpu.memory_space<vmem>>, %arg3: memref<8x1xf32, #tpu.memory_space<vmem>>, %arg4: memref<1x8x256xf32, #tpu.memory_space<vmem>>) attributes {dimension_semantics = [#tpu.dimension_semantics<parallel>], iteration_bounds = array<i64: 2>, scalar_prefetch = 0 : i64, scratch_operands = 0 : i64, tpu.core_type = #tpu.core_type<tc>, window_params = [{transform_indices = @transform_0, window_bounds = array<i64: 1, 8, 256>}, {pipeline_mode = #tpu.pipeline_mode<synchronous>, transform_indices = @transform_1, window_bounds = array<i64: 8, 1>}, {pipeline_mode = #tpu.pipeline_mode<synchronous>, transform_indices = @transform_2, window_bounds = array<i64: 8, 1>}, {transform_indices = @transform_3, window_bounds = array<i64: 1, 8, 256>}]} {
    %c0 = arith.constant 0 : index
    %c0_0 = arith.constant 0 : index
    %c0_1 = arith.constant 0 : index
    %0 = vector.load %arg1[%c0, %c0_0, %c0_1] : memref<1x8x256xf32, #tpu.memory_space<vmem>>, vector<1x8x256xf32>
    %1 = vector.shape_cast %0 : vector<1x8x256xf32> to vector<8x256xf32>
    %2 = vector.shape_cast %1 : vector<8x256xf32> to vector<1x8x256xf32>
    %cst = arith.constant dense<0.000000e+00> : vector<1xf32>
    %3 = vector.multi_reduction <add>, %2, %cst [1, 2] : vector<1x8x256xf32> to vector<1xf32>
    %4 = vector.shape_cast %3 : vector<1xf32> to vector<1x1x1xf32>
    %5 = vector.extract %4[0, 0, 0] : f32 from vector<1x1x1xf32>
    %cst_2 = arith.constant 0.000000e+00 : f32
    %6 = arith.addf %cst_2, %5 : f32
    %cst_3 = arith.constant 4.8828125E-4 : f32
    %7 = arith.mulf %6, %cst_3 : f32
    %c0_4 = arith.constant 0 : index
    %c0_5 = arith.constant 0 : index
    %c0_6 = arith.constant 0 : index
    %8 = vector.load %arg1[%c0_4, %c0_5, %c0_6] : memref<1x8x256xf32, #tpu.memory_space<vmem>>, vector<1x8x256xf32>
    %9 = vector.shape_cast %8 : vector<1x8x256xf32> to vector<8x256xf32>
    %10 = vector.broadcast %7 : f32 to vector<8x256xf32>
    %11 = arith.subf %9, %10 : vector<8x256xf32>
    %12 = arith.mulf %11, %11 : vector<8x256xf32>
    %13 = vector.shape_cast %12 : vector<8x256xf32> to vector<1x8x256xf32>
    %cst_7 = arith.constant dense<0.000000e+00> : vector<1xf32>
    %14 = vector.multi_reduction <add>, %13, %cst_7 [1, 2] : vector<1x8x256xf32> to vector<1xf32>
    %15 = vector.shape_cast %14 : vector<1xf32> to vector<1x1x1xf32>
    %16 = vector.extract %15[0, 0, 0] : f32 from vector<1x1x1xf32>
    %cst_8 = arith.constant 0.000000e+00 : f32
    %17 = arith.addf %cst_8, %16 : f32
    %cst_9 = arith.constant 4.8828125E-4 : f32
    %18 = arith.mulf %17, %cst_9 : f32
    %cst_10 = arith.constant 9.99999974E-6 : f32
    %19 = arith.addf %18, %cst_10 : f32
    %20 = math.rsqrt %19 : f32
    %c0_11 = arith.constant 0 : index
    %c0_12 = arith.constant 0 : index
    %21 = vector.load %arg2[%c0_11, %c0_12] : memref<8x1xf32, #tpu.memory_space<vmem>>, vector<8x1xf32>
    %c0_13 = arith.constant 0 : index
    %c0_14 = arith.constant 0 : index
    %22 = vector.load %arg3[%c0_13, %c0_14] : memref<8x1xf32, #tpu.memory_space<vmem>>, vector<8x1xf32>
    %23 = vector.broadcast %20 : f32 to vector<8x1xf32>
    %24 = arith.mulf %21, %23 : vector<8x1xf32>
    %25 = vector.broadcast %7 : f32 to vector<8x1xf32>
    %26 = arith.mulf %25, %24 : vector<8x1xf32>
    %27 = arith.subf %22, %26 : vector<8x1xf32>
    %c0_15 = arith.constant 0 : index
    %c0_16 = arith.constant 0 : index
    %c0_17 = arith.constant 0 : index
    %28 = vector.load %arg1[%c0_15, %c0_16, %c0_17] : memref<1x8x256xf32, #tpu.memory_space<vmem>>, vector<1x8x256xf32>
    %29 = vector.shape_cast %28 : vector<1x8x256xf32> to vector<8x256xf32>
    %30 = vector.broadcast %24 : vector<8x1xf32> to vector<8x256xf32>
    %31 = arith.mulf %29, %30 : vector<8x256xf32>
    %32 = vector.broadcast %27 : vector<8x1xf32> to vector<8x256xf32>
    %33 = arith.addf %31, %32 : vector<8x256xf32>
    %c0_18 = arith.constant 0 : index
    %c0_19 = arith.constant 0 : index
    %c0_20 = arith.constant 0 : index
    %34 = vector.load %arg4[%c0_18, %c0_19, %c0_20] : memref<1x8x256xf32, #tpu.memory_space<vmem>>, vector<1x8x256xf32>
    %35 = vector.shape_cast %34 : vector<1x8x256xf32> to vector<8x256xf32>
    %36 = vector.shape_cast %33 : vector<8x256xf32> to vector<1x8x256xf32>
    tpu.vector_store %arg4[%c0_18, %c0_19, %c0_20], %36 {strides = array<i32>} : memref<1x8x256xf32, #tpu.memory_space<vmem>>, vector<1x8x256xf32>,
    return
  }
  func.func @transform_0(%arg0: i32) -> (i32, i32, i32) {
    %c0_i32 = arith.constant 0 : i32
    %c0_i32_0 = arith.constant 0 : i32
    %c0_i32_1 = arith.constant 0 : i32
    return %arg0, %c0_i32, %c0_i32_0 : i32, i32, i32
  }
  func.func @transform_1(%arg0: i32) -> (i32, i32) {
    %c0_i32 = arith.constant 0 : i32
    %c0_i32_0 = arith.constant 0 : i32
    %c0_i32_1 = arith.constant 0 : i32
    return %c0_i32, %c0_i32_0 : i32, i32
  }
  func.func @transform_2(%arg0: i32) -> (i32, i32) {
    %c0_i32 = arith.constant 0 : i32
    %c0_i32_0 = arith.constant 0 : i32
    %c0_i32_1 = arith.constant 0 : i32
    return %c0_i32, %c0_i32_0 : i32, i32
  }
  func.func @transform_3(%arg0: i32) -> (i32, i32, i32) {
    %c0_i32 = arith.constant 0 : i32
    %c0_i32_0 = arith.constant 0 : i32
    %c0_i32_1 = arith.constant 0 : i32
    return %arg0, %c0_i32, %c0_i32_0 : i32, i32, i32
  }
}

</mosaic_0001>

<llo_original>
// kernel: tpu_custom_call.1
$region0: #{tpu_custom_call.1}
  #allocation0 [shape = 'u32[]', space=smem, size = 0x4, offset = 0x4, fixed_abs, tag = 'smem constant byte address 0x4 - core index']
  #allocation1 [shape = 'u32[72,128]{1,0:T(1,128)}', space=vmem, size = 0x9000, scoped, tag = 'internal scratch']
  %s0 = inlined_call_operand.hbm [shape: f32[2,8,256], index: 0, kind: input, shape index: {}]
  %s1 = inlined_call_operand.vmem [shape: f32[8,1], index: 1, kind: input, shape index: {}]
  %s2 = inlined_call_operand.vmem [shape: f32[8,1], index: 2, kind: input, shape index: {}]
  %s3 = inlined_call_operand.hbm [shape: f32[2,8,256], index: 3, kind: output, shape index: {}]
  %s4 = sld [smem:[#allocation0]]
  $region49: #{tpu_custom_call.1} parent=0
    _
  %s6 = ssub.s32 1, %s4
  %s7 = scalar_select 0, %s6, %s4
  $region1: #{tpu_custom_call.1} parent=0
    #allocation2 [shape = 'u8[16384]{0}', space=vmem, size = 0x4000, scoped, tag = 'input window, operand 0']
    #allocation3 [shape = 's32[2]{0}', space=sflag, size = 0x8, scoped, tag = 'scoped memory for tpu_custom_call.1']
    #allocation4 [shape = 's32[2]{0}', space=sflag, size = 0x8, scoped, tag = 'scoped memory for tpu_custom_call.1']
    #allocation5 [shape = 'u8[16384]{0}', space=vmem, size = 0x4000, scoped, tag = 'output window, operand 0']
    %8 = vsyncpa [#allocation3], 0
    %s9 = scalar_lea.sflag [#allocation3], 1
    %10 = vsyncpa %s9, 0
    %11 = vsyncpa [#allocation4], 0
    %s12 = scalar_lea.sflag [#allocation4], 1
    %13 = vsyncpa %s12, 0
    loop: start=0, step=1, limit=4
    $region2: #{tpu_custom_call.1} parent=1 // loop_pre_header
      _
    $region3: #{tpu_custom_call.1} parent=1 // loop_header
      %s15 = sphi 0, %s19
      %p16 = scmp.ge.s32.totalorder %s15, 4
      %s25 = sphi 0, %s27
      %s28 = sphi 0, %s25
      %s29 = sphi 0, %s28
      %s45 = sphi 0, %s29
      %s49 = sphi 0, %s49
      %s51 = sphi 0, %s49
      %s52 = sphi 0, %s51
      %s66 = sphi 0, %s52
      %s70 = sphi 0, %s70
      %s72 = sphi 0, %s70
      %s73 = sphi 0, %s72
      %s87 = sphi 0, %s73
      %s93 = sphi 0, %s95
      %s96 = sphi 0, %s93
      %s97 = sphi 0, %s96
      %s113 = sphi 0, %s97
    $region4: #{tpu_custom_call.1} parent=1 // loop_header_branch
      %18 = sbr.rel (%p16) target = $region8
    $region5: #{tpu_custom_call.1} parent=1 // loop_body
      %s20 = ssub.s32 %s15, 1
      %s21 = ssub.s32 %s15, 2
      %s22 = sadd.s32 %s15, 1
      %s23 = ssub.s32 %s15, %s22
      %p24 = scmp.eq.s32.totalorder %s23, 0
      %s26 = sadd.s32 %s25, 1
      %s27 = scalar_select %p24, %s25, %s26
      %p30 = pneg %p24
      %p31 = scmp.eq.s32.totalorder %s15, 1
      %p32 = por %p30, %p31
      %p33 = scmp.ne.s32.totalorder %s25, %s28
      %p34 = scmp.eq.s32.totalorder %s15, 0
      %p35 = por %p33, %p34
      %p36 = scmp.ne.s32.totalorder %s25, %s28
      %p37 = scmp.eq.s32.totalorder %s20, 1
      %p38 = por %p36, %p37
      %p39 = scmp.ne.s32.totalorder %s28, %s29
      %p40 = scmp.eq.s32.totalorder %s20, 0
      %p41 = por %p39, %p40
      %p42 = scmp.ne.s32.totalorder %s28, %s29
      %p43 = scmp.eq.s32.totalorder %s21, 1
      %p44 = por %p42, %p43
      %p46 = scmp.ne.s32.totalorder %s29, %s45
      %p47 = scmp.eq.s32.totalorder %s21, 0
      %p48 = por %p46, %p47
      %s50 = sadd.s32 %s49, 1
      %p53 = scmp.eq.s32.totalorder %s15, 1
      %p54 = scmp.ne.s32.totalorder %s49, %s51
      %p55 = scmp.eq.s32.totalorder %s15, 0
      %p56 = por %p54, %p55
      %p57 = scmp.ne.s32.totalorder %s49, %s51
      %p58 = scmp.eq.s32.totalorder %s20, 1
      %p59 = por %p57, %p58
      %p60 = scmp.ne.s32.totalorder %s51, %s52
      %p61 = scmp.eq.s32.totalorder %s20, 0
      %p62 = por %p60, %p61
      %p63 = scmp.ne.s32.totalorder %s51, %s52
      %p64 = scmp.eq.s32.totalorder %s21, 1
      %p65 = por %p63, %p64
      %p67 = scmp.ne.s32.totalorder %s52, %s66
      %p68 = scmp.eq.s32.totalorder %s21, 0
      %p69 = por %p67, %p68
      %s71 = sadd.s32 %s70, 1
      %p74 = scmp.eq.s32.totalorder %s15, 1
      %p75 = scmp.ne.s32.totalorder %s70, %s72
      %p76 = scmp.eq.s32.totalorder %s15, 0
      %p77 = por %p75, %p76
      %p78 = scmp.ne.s32.totalorder %s70, %s72
      %p79 = scmp.eq.s32.totalorder %s20, 1
      %p80 = por %p78, %p79
      %p81 = scmp.ne.s32.totalorder %s72, %s73
      %p82 = scmp.eq.s32.totalorder %s20, 0
      %p83 = por %p81, %p82
      %p84 = scmp.ne.s32.totalorder %s72, %s73
      %p85 = scmp.eq.s32.totalorder %s21, 1
      %p86 = por %p84, %p85
      %p88 = scmp.ne.s32.totalorder %s73, %s87
      %p89 = scmp.eq.s32.totalorder %s21, 0
      %p90 = por %p88, %p89
      %s91 = ssub.s32 %s15, %s22
      %p92 = scmp.eq.s32.totalorder %s91, 0
      %s94 = sadd.s32 %s93, 1
      %s95 = scalar_select %p92, %s93, %s94
      %p98 = pneg %p92
      %p99 = scmp.eq.s32.totalorder %s15, 1
      %p100 = por %p98, %p99
      %p101 = scmp.ne.s32.totalorder %s93, %s96
      %p102 = scmp.eq.s32.totalorder %s15, 0
      %p103 = por %p101, %p102
      %p104 = scmp.ne.s32.totalorder %s93, %s96
      %p105 = scmp.eq.s32.totalorder %s20, 1
      %p106 = por %p104, %p105
      %p107 = scmp.ne.s32.totalorder %s96, %s97
      %p108 = scmp.eq.s32.totalorder %s20, 0
      %p109 = por %p107, %p108
      %p110 = scmp.ne.s32.totalorder %s96, %s97
      %p111 = scmp.eq.s32.totalorder %s21, 1
      %p112 = por %p110, %p111
      %p114 = scmp.ne.s32.totalorder %s97, %s113
      %p115 = scmp.eq.s32.totalorder %s21, 0
      %p116 = por %p114, %p115
      %p117 = scmp.le.s32.totalorder 1, %s15
      %p118 = scmp.lt.s32.totalorder %s15, 3
      %p119 = pnand %p117, %p118
      %p120 = pneg %p119
      // Predicated region
      $region9: #{tpu_custom_call.1} parent=5 // pred_check
        _
      $region10: #{tpu_custom_call.1} parent=5 // pred_check_branch
        %122 = sbr.rel (%p119) target = $region12
      $region11: #{tpu_custom_call.1} parent=5 // pred_region
        %s123 = ssub.s32 %s15, 1
        // Predicated region
        $region13: #{tpu_custom_call.1} parent=11 // pred_check
          %p124 = pneg %p62
        $region14: #{tpu_custom_call.1} parent=11 // pred_check_branch
          %126 = sbr.rel (%p124) target = $region16
        $region15: #{tpu_custom_call.1} parent=11 // pred_region
          _
        $region16: #{tpu_custom_call.1} parent=11 // pred_fallthru
          _
        // Predicated region
        $region17: #{tpu_custom_call.1} parent=11 // pred_check
          %p127 = pneg %p83
        $region18: #{tpu_custom_call.1} parent=11 // pred_check_branch
          %129 = sbr.rel (%p127) target = $region20
        $region19: #{tpu_custom_call.1} parent=11 // pred_region
          _
        $region20: #{tpu_custom_call.1} parent=11 // pred_fallthru
          _
      $region12: #{tpu_custom_call.1} parent=5 // pred_fallthru
        _
      %p130 = scmp.lt.s32.totalorder %s15, 2
      // Predicated region
      $region21: #{tpu_custom_call.1} parent=5 // pred_check
        %p131 = pneg %p130
      $region22: #{tpu_custom_call.1} parent=5 // pred_check_branch
        %133 = sbr.rel (%p131) target = $region24
      $region23: #{tpu_custom_call.1} parent=5 // pred_region
        // Predicated region
        $region25: #{tpu_custom_call.1} parent=23 // pred_check
          %p134 = pneg %p35
        $region26: #{tpu_custom_call.1} parent=23 // pred_check_branch
          %136 = sbr.rel (%p134) target = $region28
        $region27: #{tpu_custom_call.1} parent=23 // pred_region
          %s137 = sand.u32 %s25, 1
          %s138 = scalar_lea.sflag [#allocation3], %s137
          %s139 = sand.u32 %s25, 1
          %s140 = smul.addr %s139, 16
          %s141 = scalar_lea.vmem [#allocation2], %s140
          %143 = vsyncadd %s138, 0
          %s144 = smul.addr %s15, 2
          %s145 = smul.addr %s144, 8
          %s146 = scalar_lea.hbm %s0, %s145
          %s148 = sshll.u32 %s146, 4
          %s149 = int_to_ptr.hbm [resolvable:$true] %s148
          %s150 = sshll.u32 %s141, 4
          %s151 = int_to_ptr.vmem [resolvable:$true] %s150
          %153 = dma.hbm_to_vmem [thread:$0]  %s149, 256, %s151, %s138
        $region28: #{tpu_custom_call.1} parent=23 // pred_fallthru
          _
      $region24: #{tpu_custom_call.1} parent=5 // pred_fallthru
        _
      %p154 = scmp.le.s32.totalorder 1, %s15
      %p155 = scmp.lt.s32.totalorder %s15, 3
      %p156 = pnand %p154, %p155
      %p157 = pneg %p156
      // Predicated region
      $region29: #{tpu_custom_call.1} parent=5 // pred_check
        _
      $region30: #{tpu_custom_call.1} parent=5 // pred_check_branch
        %159 = sbr.rel (%p156) target = $region32
      $region31: #{tpu_custom_call.1} parent=5 // pred_region
        %s160 = ssub.s32 %s15, 1
        %s161 = sand.u32 %s28, 1
        %s162 = scalar_lea.sflag [#allocation3], %s161
        %s163 = sand.u32 %s28, 1
        %s164 = smul.addr %s163, 16
        %s165 = scalar_lea.vmem [#allocation2], %s164
        // Predicated region
        $region33: #{tpu_custom_call.1} parent=31 // pred_check
          %p166 = pneg %p41
        $region34: #{tpu_custom_call.1} parent=31 // pred_check_branch
          %168 = sbr.rel (%p166) target = $region36
        $region35: #{tpu_custom_call.1} parent=31 // pred_region
          %170 = dma.done %s162, 256
        $region36: #{tpu_custom_call.1} parent=31 // pred_fallthru
          _
        %s171 = sand.u32 %s28, 1
        %s172 = scalar_lea.sflag [#allocation3], %s171
        %s173 = sand.u32 %s28, 1
        %s174 = smul.addr %s173, 16
        %s175 = scalar_lea.vmem [#allocation2], %s174
        %p176 = pneg %p41
        %p177 = pneg %p38
        %p178 = pneg %p62
        %p179 = pneg %p59
        %p180 = pneg %p83
        %p181 = pneg %p80
        %p182 = pneg %p109
        %p183 = pneg %p106
        %s184 = sand.u32 %s96, 1
        %s185 = scalar_lea.sflag [#allocation4], %s184
        %s186 = sand.u32 %s96, 1
        %s187 = smul.addr %s186, 16
        %s188 = scalar_lea.vmem [#allocation5], %s187
        %v189 = vld [vmem:[%s165] sm:$0xff]
        %v190 = vld [vmem:[%s165 + $0x8] sm:$0xff]
        %v191 = vadd.f32 %v189, %v190
        %192 = vadd.xlane.f32.xlu0 %v191
        %v193 = vpop.xlane.xlu0 %192
        %v194 = vrot.slane %v193, 4
        %v195 = vadd.f32 %v193, %v194
        %v196 = vrot.slane %v195, 2
        %v197 = vadd.f32 %v195, %v196
        %v198 = vrot.slane %v197, 1
        %v199 = vadd.f32 %v197, %v198
        %s200 = vtos %v199
        %s201 = sadd.f32 %s200, 0.0
        %s202 = smul.f32 %s201, 0.00048828125
        %v203 = vstv %s202
        %v204 = vsub.f32 %v189, %v203
        %v205 = vsub.f32 %v190, %v203
        %v206 = vmul.f32 %v204, %v204
        %v207 = vmul.f32 %v205, %v205
        %v208 = vadd.f32 %v206, %v207
        %209 = vadd.xlane.f32.xlu0 %v208
        %v210 = vpop.xlane.xlu0 %209
        %v211 = vrot.slane %v210, 4
        %v212 = vadd.f32 %v210, %v211
        %v213 = vrot.slane %v212, 2
        %v214 = vadd.f32 %v212, %v213
        %v215 = vrot.slane %v214, 1
        %v216 = vadd.f32 %v214, %v215
        %s217 = vtos %v216
        %s218 = sadd.f32 %s217, 0.0
        %s219 = smul.f32 %s218, 0.00048828125
        %s220 = sadd.f32 %s219, 1e-05
        %v221 = vstv %s220
        %v222 = vrsqrt.pop %v221
        %v223 = vmul.f32 %v222, %v221
        %v224 = vmul.f32 %v223, %v222
        %v225 = vmul.f32 0.5, %v224
        %v226 = vsub.f32 1.5, %v225
        %v227 = vmul.f32 %v222, %v226
        %vm228 = vweird.f32 %v221
        %vm229 = vweird.f32 %v222
        %vm230 = vmor %vm228, %vm229
        %v231 = vsel %vm230, %v222, %v227
        %s232 = vtos %v231
        %v233 = vld [vmem:[%s1] sm:$0xff]
        %v234 = vld [vmem:[%s2] sm:$0xff]
        %v235 = vstv %s232
        %v236 = vmul.f32 %v233, %v235
        %v237 = vmul.f32 %v203, %v236
        %v238 = vsub.f32 %v234, %v237
        %240 = vset.pattern.permute.xlu0 0
        %241 = vperm.xlu0 %240, %v236
        %v242 = vpop.permute.xlu0 %241
        %v244 = vmul.f32 %v189, %v242
        %v245 = vmul.f32 %v190, %v242
        %247 = vset.pattern.permute.xlu0 0
        %248 = vperm.xlu0 %247, %v238
        %v249 = vpop.permute.xlu0 %248
        %v251 = vadd.f32 %v244, %v249
        %v252 = vadd.f32 %v245, %v249
        %253 = vst [vmem:[%s188] sm:$0xff] %v251
        %254 = vst [vmem:[%s188 + $0x8] sm:$0xff] %v252
        %s255 = sand.u32 %s96, 1
        %s256 = scalar_lea.sflag [#allocation4], %s255
        %s257 = sand.u32 %s96, 1
        %s258 = smul.addr %s257, 16
        %s259 = scalar_lea.vmem [#allocation5], %s258
        // Predicated region
        $region37: #{tpu_custom_call.1} parent=31 // pred_check
          %p260 = pneg %p106
        $region38: #{tpu_custom_call.1} parent=31 // pred_check_branch
          %262 = sbr.rel (%p260) target = $region40
        $region39: #{tpu_custom_call.1} parent=31 // pred_region
          %264 = vsyncadd %s256, 0
          %s265 = smul.addr %s20, 2
          %s266 = smul.addr %s265, 8
          %s267 = scalar_lea.hbm %s3, %s266
          %s269 = sshll.u32 %s259, 4
          %s270 = int_to_ptr.vmem [resolvable:$true] %s269
          %s271 = sshll.u32 %s267, 4
          %s272 = int_to_ptr.hbm [resolvable:$true] %s271
          %274 = dma.vmem_to_hbm [thread:$0]  %s270, 256, %s272, %s256
        $region40: #{tpu_custom_call.1} parent=31 // pred_fallthru
          _
      $region32: #{tpu_custom_call.1} parent=5 // pred_fallthru
        _
      %p275 = scmp.le.s32.totalorder 2, %s15
      // Predicated region
      $region41: #{tpu_custom_call.1} parent=5 // pred_check
        %p276 = pneg %p275
      $region42: #{tpu_custom_call.1} parent=5 // pred_check_branch
        %278 = sbr.rel (%p276) target = $region44
      $region43: #{tpu_custom_call.1} parent=5 // pred_region
        %s279 = ssub.s32 %s15, 2
        // Predicated region
        $region45: #{tpu_custom_call.1} parent=43 // pred_check
          %p280 = pneg %p112
        $region46: #{tpu_custom_call.1} parent=43 // pred_check_branch
          %282 = sbr.rel (%p280) target = $region48
        $region47: #{tpu_custom_call.1} parent=43 // pred_region
          %s283 = sand.u32 %s97, 1
          %s284 = scalar_lea.sflag [#allocation4], %s283
          %s285 = sand.u32 %s97, 1
          %s286 = smul.addr %s285, 16
          %s287 = scalar_lea.vmem [#allocation5], %s286
          %289 = dma.done %s284, 256
        $region48: #{tpu_custom_call.1} parent=43 // pred_fallthru
          _
      $region44: #{tpu_custom_call.1} parent=5 // pred_fallthru
        _
    $region6: #{tpu_custom_call.1} parent=1 // loop_footer
      %s19 = sadd.s32 1, %s15
    $region7: #{tpu_custom_call.1} parent=1 // loop_footer_branch
      %14 = sbr.rel target = $region3
    $region8: #{tpu_custom_call.1} parent=1 // loop_exit
      _
    %290 = vsyncpa [#allocation3], 1
    %s291 = scalar_lea.sflag [#allocation3], 1
    %292 = vsyncpa %s291, 1
    %293 = vsyncpa [#allocation4], 1
    %s294 = scalar_lea.sflag [#allocation4], 1
    %295 = vsyncpa %s294, 1

</llo_original>
